<compile_context>
chip_gen: v7x
topology: tpu7x:2x2x1
jax: 0.10.0
libtpu: 0.0.40
codegen_flags: <defaults>
</compile_context>

<pallas_src>
import functools

import jax
import jax.numpy as jnp
from jax.experimental import pallas as pl
from jax.experimental.pallas import tpu as pltpu


def _gap_kernel(x_ref, o_ref, acc_ref, *, inv_n, s_total, ts, mask_spatial):
    """One (TM, TS) tile of rows x spatial. Accumulates row sums in f32."""
    k = pl.program_id(1)

    @pl.when(k == 0)
    def _():
        acc_ref[...] = jnp.zeros_like(acc_ref)

    x = x_ref[...].astype(jnp.float32)
    if mask_spatial:
        # Last spatial block overhangs the true extent S; zero the overhang so
        # it cannot contaminate the per-row sum. (Cheap VPU work, fully hidden
        # under the HBM-bound input stream.)
        col = jax.lax.broadcasted_iota(jnp.int32, x.shape, 1) + k * ts
        x = jnp.where(col < s_total, x, 0.0)

    acc_ref[...] += jnp.sum(x, axis=-1, keepdims=True)

    @pl.when(k == pl.num_programs(1) - 1)
    def _():
        o_ref[...] = (acc_ref[...] * inv_n).astype(o_ref.dtype)


@functools.partial(jax.jit, static_argnames=("per_buf_bytes",))
def global_avg_pool(x, *, per_buf_bytes=8 * 1024 * 1024):
    """Pallas implementation of _GlobalAvgPool.forward.

    Args:
      x: (B, C, *spatial) array with 1, 2 or 3 trailing spatial dims.
      per_buf_bytes: VMEM budget for one pipeline input buffer (static; the
        default targets ~16 MiB double-buffered).
    Returns:
      (B, C) array of spatial means (same dtype as x).
    """
    assert x.ndim >= 3, "Expecting (B, C, *spatial) with >=1 spatial dim."
    batch, ch = x.shape[0], x.shape[1]
    s = 1
    for d in x.shape[2:]:
        s *= d
    bc = batch * ch

    # ---- glue: flatten to (B*C, S) rows (layout-preserving, no copy) ----
    x2 = x.reshape(bc, s)

    # ---- tile selection (static shapes under jit) ----
    itemsize = jnp.dtype(x.dtype).itemsize
    row_bytes = s * itemsize
    bc_ceil8 = ((bc + 7) // 8) * 8

    if 8 * row_bytes <= per_buf_bytes:
        # Whole spatial extent in one block; pick the largest row tile that
        # fits the budget (sublane-aligned, capped at 4096 rows).
        ts = s
        tm = per_buf_bytes // max(1, row_bytes)
        tm = int(max(8, min(4096, (tm // 8) * 8)))
        tm = min(tm, bc_ceil8)
        mask_spatial = False
    else:
        # Huge spatial extent: tile the reduction along S instead of blowing
        # VMEM. 8 rows per block, lane tile a multiple of 128.
        tm = min(8, bc_ceil8)
        ts = max(128, ((per_buf_bytes // (tm * itemsize)) // 128) * 128)
        ts = min(ts, ((s + 127) // 128) * 128)
        mask_spatial = (s % ts) != 0

    grid_rows = pl.cdiv(bc, tm)
    grid_s = pl.cdiv(s, ts)
    inv_n = 1.0 / float(s)

    out = pl.pallas_call(
        functools.partial(_gap_kernel, inv_n=inv_n, s_total=s, ts=ts,
                          mask_spatial=mask_spatial),
        out_shape=jax.ShapeDtypeStruct((bc, 1), x.dtype),
        grid_spec=pltpu.PrefetchScalarGridSpec(
            num_scalar_prefetch=0,
            grid=(grid_rows, grid_s),
            in_specs=[pl.BlockSpec((tm, ts), lambda i, k: (i, k))],
            out_specs=pl.BlockSpec((tm, 1), lambda i, k: (i, 0)),
            scratch_shapes=[pltpu.VMEM((tm, 1), jnp.float32)],
        ),
        compiler_params=pltpu.CompilerParams(
            dimension_semantics=("parallel", "arbitrary"),
            vmem_limit_bytes=32 * 1024 * 1024,
        ),
    )(x2)

    return out.reshape(batch, ch)


def _reference(x):
    """Pure-jnp reference mirroring the PyTorch semantics."""
    axes = tuple(range(2, x.ndim))
    return jnp.mean(x, axis=axes).astype(x.dtype)


if __name__ == "__main__":
    key = jax.random.PRNGKey(0)

    # 2-D case (matches _GlobalAvgPool(dim=2)).
    x = jax.random.normal(key, (2, 4, 16, 16), dtype=jnp.float32)
    out = global_avg_pool(x)
    jax.block_until_ready(out)
    assert out.shape == (2, 4), out.shape
    assert jnp.allclose(out, _reference(x), atol=1e-5, rtol=1e-5)

    # 1-D case (dim=1).
    x1 = jax.random.normal(jax.random.PRNGKey(1), (2, 4, 32), dtype=jnp.float32)
    o1 = global_avg_pool(x1)
    jax.block_until_ready(o1)
    assert o1.shape == (2, 4)
    assert jnp.allclose(o1, _reference(x1), atol=1e-5, rtol=1e-5)

    # 3-D case (dim=3); B*C = 6 exercises the partial (overhanging) row block.
    x3 = jax.random.normal(jax.random.PRNGKey(2), (2, 3, 4, 8, 8), dtype=jnp.float32)
    o3 = global_avg_pool(x3)
    jax.block_until_ready(o3)
    assert o3.shape == (2, 3)
    assert jnp.allclose(o3, _reference(x3), atol=1e-5, rtol=1e-5)

    # bf16 path: kernel reads bf16 from HBM, reduces in f32.
    xb = jax.random.normal(jax.random.PRNGKey(3), (2, 4, 16, 16)).astype(jnp.bfloat16)
    ob = global_avg_pool(xb)
    jax.block_until_ready(ob)
    assert jnp.allclose(ob.astype(jnp.float32),
                        _reference(xb).astype(jnp.float32), atol=1e-2, rtol=1e-2)

    # Force the spatial-tiled (large-S) path on a small input, including the
    # masked partial spatial block (S = 200, TS = 128).
    xs = jax.random.normal(jax.random.PRNGKey(4), (2, 4, 10, 20), dtype=jnp.float32)
    os_ = global_avg_pool(xs, per_buf_bytes=4096)
    jax.block_until_ready(os_)
    assert os_.shape == (2, 4)
    assert jnp.allclose(os_, _reference(xs), atol=1e-5, rtol=1e-5)

    print("KERNEL_OK")
</pallas_src>

<mosaic_0001>
module attributes {stable_mosaic.version = 11 : i64} {
  func.func @_gap_kernel(%arg0: i32, %arg1: i32, %arg2: memref<8x256xf32, #tpu.memory_space<vmem>>, %arg3: memref<8x1xf32, #tpu.memory_space<vmem>>, %arg4: memref<8x1xf32, #tpu.memory_space<vmem>>) attributes {dimension_semantics = [#tpu.dimension_semantics<parallel>, #tpu.dimension_semantics<arbitrary>], iteration_bounds = array<i64: 1, 1>, scalar_prefetch = 0 : i64, scratch_operands = 1 : i64, tpu.core_type = #tpu.core_type<tc>, window_params = [{transform_indices = @transform_0, window_bounds = array<i64: 8, 256>}, {transform_indices = @transform_1, window_bounds = array<i64: 8, 1>}]} {
    %c0_i32 = arith.constant 0 : i32
    %0 = arith.cmpi eq, %arg1, %c0_i32 : i32
    %1 = arith.extui %0 : i1 to i32
    %c0_i32_0 = arith.constant 0 : i32
    %2 = arith.cmpi ne, %1, %c0_i32_0 : i32
    scf.if %2 {
      %cst_8 = arith.constant 0.000000e+00 : f32
      %12 = vector.broadcast %cst_8 : f32 to vector<8x1xf32>
      %c0_9 = arith.constant 0 : index
      %c0_10 = arith.constant 0 : index
      %13 = vector.load %arg4[%c0_9, %c0_10] : memref<8x1xf32, #tpu.memory_space<vmem>>, vector<8x1xf32>
      tpu.vector_store %arg4[%c0_9, %c0_10], %12 {strides = array<i32>} : memref<8x1xf32, #tpu.memory_space<vmem>>, vector<8x1xf32>,
    } else {
    }
    %c0 = arith.constant 0 : index
    %c0_1 = arith.constant 0 : index
    %3 = vector.load %arg2[%c0, %c0_1] : memref<8x256xf32, #tpu.memory_space<vmem>>, vector<8x256xf32>
    %c0_2 = arith.constant 0 : index
    %c0_3 = arith.constant 0 : index
    %4 = vector.load %arg4[%c0_2, %c0_3] : memref<8x1xf32, #tpu.memory_space<vmem>>, vector<8x1xf32>
    %cst = arith.constant dense<0.000000e+00> : vector<8xf32>
    %5 = vector.multi_reduction <add>, %3, %cst [1] : vector<8x256xf32> to vector<8xf32>
    %6 = vector.shape_cast %5 : vector<8xf32> to vector<8x1xf32>
    %7 = arith.addf %4, %6 : vector<8x1xf32>
    %c0_4 = arith.constant 0 : index
    %c0_5 = arith.constant 0 : index
    %8 = vector.load %arg4[%c0_4, %c0_5] : memref<8x1xf32, #tpu.memory_space<vmem>>, vector<8x1xf32>
    tpu.vector_store %arg4[%c0_4, %c0_5], %7 {strides = array<i32>} : memref<8x1xf32, #tpu.memory_space<vmem>>, vector<8x1xf32>,
    %c0_i32_6 = arith.constant 0 : i32
    %9 = arith.cmpi eq, %arg1, %c0_i32_6 : i32
    %10 = arith.extui %9 : i1 to i32
    %c0_i32_7 = arith.constant 0 : i32
    %11 = arith.cmpi ne, %10, %c0_i32_7 : i32
    scf.if %11 {
      %c0_8 = arith.constant 0 : index
      %c0_9 = arith.constant 0 : index
      %12 = vector.load %arg4[%c0_8, %c0_9] : memref<8x1xf32, #tpu.memory_space<vmem>>, vector<8x1xf32>
      %cst_10 = arith.constant 3.906250e-03 : f32
      %13 = vector.broadcast %cst_10 : f32 to vector<8x1xf32>
      %14 = arith.mulf %12, %13 : vector<8x1xf32>
      %c0_11 = arith.constant 0 : index
      %c0_12 = arith.constant 0 : index
      %15 = vector.load %arg3[%c0_11, %c0_12] : memref<8x1xf32, #tpu.memory_space<vmem>>, vector<8x1xf32>
      tpu.vector_store %arg3[%c0_11, %c0_12], %14 {strides = array<i32>} : memref<8x1xf32, #tpu.memory_space<vmem>>, vector<8x1xf32>,
    } else {
    }
    return
  }
  func.func @transform_0(%arg0: i32, %arg1: i32) -> (i32, i32) {
    %c0_i32 = arith.constant 0 : i32
    return %arg0, %arg1 : i32, i32
  }
  func.func @transform_1(%arg0: i32, %arg1: i32) -> (i32, i32) {
    %c0_i32 = arith.constant 0 : i32
    %c0_i32_0 = arith.constant 0 : i32
    return %arg0, %c0_i32 : i32, i32
  }
}

</mosaic_0001>

<llo_original>
// kernel: global_avg_pool.1
$region0: #{global_avg_pool.1}
  #allocation0 [shape = 'u32[]', space=smem, size = 0x4, offset = 0x4, fixed_abs, tag = 'smem constant byte address 0x4 - core index']
  #allocation1 [shape = 'u32[144,128]{1,0:T(1,128)}', space=vmem, size = 0x12000, scoped, tag = 'internal scratch']
  #allocation2 [shape = 'f32[8,1]{1,0:T(8,128)}', space=vmem, size = 0x1000, scoped, tag = 'scratch operand']
  %s0 = inlined_call_operand.vmem [shape: f32[8,256], index: 0, kind: input, shape index: {}]
  %s1 = inlined_call_operand.vmem [shape: f32[8,1], index: 1, kind: output, shape index: {}]
  %s2 = sld [smem:[#allocation0]]
  $region22: #{global_avg_pool.1} parent=0
    _
  %s4 = ssub.s32 1, %s2
  %s5 = scalar_select 0, %s4, %s2
  // Predicated region
  $region2: #{global_avg_pool.1} parent=0 // pred_check
    _
  $region3: #{global_avg_pool.1} parent=0 // pred_check_branch
    %7 = sbr.rel (0) target = $region5
  $region4: #{global_avg_pool.1} parent=0 // pred_region
    _
  $region5: #{global_avg_pool.1} parent=0 // pred_fallthru
    _
  %p8 = scmp.eq.s32.totalorder 0, 0
  // Predicated region
  $region6: #{global_avg_pool.1} parent=0 // pred_check
    %p9 = pneg %p8
  $region7: #{global_avg_pool.1} parent=0 // pred_check_branch
    %11 = sbr.rel (%p9) target = $region9
  $region8: #{global_avg_pool.1} parent=0 // pred_region
    %vm12 = vcmask 7168
    %13 = vst.msk [vmem:[#allocation2] sm:$0xff] %vm12, 0.0
  $region9: #{global_avg_pool.1} parent=0 // pred_fallthru
    _
  %v14 = vld [vmem:[%s0] sm:$0xff]
  %v15 = vld [vmem:[%s0 + $0x8] sm:$0xff]
  %v16 = vld [vmem:[#allocation2] sm:$0xff]
  %v17 = vadd.f32 %v14, %v15
  %18 = vadd.xlane.f32.xlu0 %v17
  %v19 = vpop.xlane.xlu0 %18
  %v20 = vadd.f32 %v16, %v19
  %vm21 = vcmask 7168
  %22 = vst.msk [vmem:[#allocation2] sm:$0xff] %vm21, %v20
  // Predicated region
  $region10: #{global_avg_pool.1} parent=0 // pred_check
    %p23 = pneg %p8
  $region11: #{global_avg_pool.1} parent=0 // pred_check_branch
    %25 = sbr.rel (%p23) target = $region13
  $region12: #{global_avg_pool.1} parent=0 // pred_region
    %v26 = vld [vmem:[#allocation2] sm:$0xff]
    %v27 = vmul.f32 %v26, 0.00390625
    %28 = vst.msk [vmem:[%s1] sm:$0xff] %vm21, %v27
  $region13: #{global_avg_pool.1} parent=0 // pred_fallthru
    _
  // Predicated region
  $region14: #{global_avg_pool.1} parent=0 // pred_check
    _
  $region15: #{global_avg_pool.1} parent=0 // pred_check_branch
    %30 = sbr.rel (0) target = $region17
  $region16: #{global_avg_pool.1} parent=0 // pred_region
    _
  $region17: #{global_avg_pool.1} parent=0 // pred_fallthru
    _
  // Predicated region
  $region18: #{global_avg_pool.1} parent=0 // pred_check
    _
  $region19: #{global_avg_pool.1} parent=0 // pred_check_branch
    %32 = sbr.rel (0) target = $region21
  $region20: #{global_avg_pool.1} parent=0 // pred_region
    _
  $region21: #{global_avg_pool.1} parent=0 // pred_fallthru
    _

</llo_original>
